<compile_context>
chip_gen: v5e
topology: v5e:2x2
jax: 0.10.0
libtpu: 0.0.40
codegen_flags: <defaults>
</compile_context>

<pallas_src>
import jax
import jax.numpy as jnp
from jax.experimental import pallas as pl
from jax.experimental.pallas import tpu as pltpu


# ----------------------------------------------------------------------------- #
# Helpers
# ----------------------------------------------------------------------------- #
def _round_up(x, m):
    return -(-x // m) * m


def _first(gen):
    return next(gen, None)


def _vmem_limit_bytes():
    """Per-core scoped-VMEM limit with generation headroom.

    v7x (64 MiB/TC) -> 48 MiB; v5e/v6e (128 MiB) -> 96 MiB.  Falls back to the
    conservative v7x figure if the hardware query is unavailable."""
    cap = 64 << 20
    try:
        info = pltpu.get_tpu_info()
        cap = int(getattr(info, "vmem_capacity_bytes", cap)) or cap
    except Exception:
        pass
    return min(int(cap * 3 // 4), 96 << 20)


_TM_CANDIDATES = (512, 256, 128, 64, 32, 16, 8)
_TN_CANDIDATES = (512, 256, 128)
_TK_CANDIDATES = (2048, 1024, 512, 256, 128)


# ----------------------------------------------------------------------------- #
# Kernels
# ----------------------------------------------------------------------------- #
def _matmul_bias_kernel(x_ref, w_ref, b_ref, o_ref):
    # Full-K in one tile: no accumulator, no init/finalize branches.
    acc = jnp.dot(x_ref[...], w_ref[...], preferred_element_type=jnp.float32)
    o_ref[...] = (acc + b_ref[...].astype(jnp.float32)).astype(o_ref.dtype)


def _matmul_bias_kernel_ksplit_f32(x_ref, w_ref, b_ref, o_ref):
    # K-tiled, f32 output: accumulate directly into the k-invariant output
    # block (resident across the K axis) -- no VMEM scratch needed.
    k = pl.program_id(2)

    @pl.when(k == 0)
    def _():
        o_ref[...] = jnp.broadcast_to(b_ref[...].astype(jnp.float32), o_ref.shape)

    o_ref[...] += jnp.dot(x_ref[...], w_ref[...], preferred_element_type=jnp.float32)


def _matmul_bias_kernel_ksplit_acc(x_ref, w_ref, b_ref, o_ref, acc_ref):
    # K-tiled, non-f32 output: f32 scratch accumulator, bias added at the end.
    k = pl.program_id(2)

    @pl.when(k == 0)
    def _():
        acc_ref[...] = jnp.zeros_like(acc_ref)

    acc_ref[...] += jnp.dot(x_ref[...], w_ref[...], preferred_element_type=jnp.float32)

    @pl.when(k == pl.num_programs(2) - 1)
    def _():
        o_ref[...] = (acc_ref[...] + b_ref[...].astype(jnp.float32)).astype(o_ref.dtype)


# ----------------------------------------------------------------------------- #
# Tiled matmul + bias wrapper:  y = x2d @ w_io + bias_row
# ----------------------------------------------------------------------------- #
def merged_linear(x2d, w_io, bias_row):
    M, K = x2d.shape
    K2, N = w_io.shape
    assert K2 == K and bias_row.shape == (1, N)
    dtype = x2d.dtype
    it = jnp.dtype(dtype).itemsize

    # Lane axes (K, N) are zero-padded to multiples of 128 (exact: zero K-rows
    # of W contribute nothing; extra N-columns are sliced off).
    Kp = _round_up(K, 128)
    Np = _round_up(N, 128)

    vmem_limit = _vmem_limit_bytes()
    budget = int(vmem_limit * 0.9)

    have_buffered = hasattr(pl, "Buffered")
    w_res_bufs = 1 if have_buffered else 2  # resident-W buffer count

    # Row-tile candidates, largest first; never exceed the (8-aligned) row count.
    m8 = _round_up(M, 8)
    tm_cands = []
    for c in _TM_CANDIDATES:
        t = min(c, m8)
        if t not in tm_cands:
            tm_cands.append(t)

    # --- Path A: merged weight fully resident in VMEM, grid over M only. -------
    plan = _first(
        ("resident", tm, Np, Kp)
        for tm in tm_cands
        if (w_res_bufs * (Kp * Np + Np) + 2 * tm * Kp + 2 * tm * Np) * it <= budget
    )
    # --- Path B: full-K strips, grid over (M, N); no reduction axis. -----------
    if plan is None:
        plan = _first(
            ("full_k", tm, tn, Kp)
            for tm in tm_cands
            for tn in _TN_CANDIDATES
            if Np % tn == 0
            and (2 * tm * Kp + 2 * Kp * tn + 2 * tn + 2 * tm * tn) * it <= budget
        )
    # --- Path C: general 3D tiling with K innermost (huge-K fallback). ---------
    if plan is None:
        plan = _first(
            ("k_split", tm, tn, tk)
            for tm in tm_cands
            for tn in _TN_CANDIDATES
            for tk in _TK_CANDIDATES
            if Np % tn == 0 and Kp % tk == 0
            and ((2 * tm * tk + 2 * tk * tn + 2 * tn + 2 * tm * tn) * it
                 + (0 if dtype == jnp.float32 else tm * tn * 4)) <= budget
        )
    if plan is None:  # last-resort minimal tiling
        plan = ("k_split", 8, 128, 128)

    mode, tm, tn, tk = plan
    Mp = _round_up(M, tm)

    # Zero-pad operands to the tiled shapes (exact; sliced off below).
    xp = x2d if (Mp, Kp) == (M, K) else jnp.pad(x2d, ((0, Mp - M), (0, Kp - K)))
    wp = w_io if (Kp, Np) == (K, N) else jnp.pad(w_io, ((0, Kp - K), (0, Np - N)))
    bp = bias_row if Np == N else jnp.pad(bias_row, ((0, 0), (0, Np - N)))

    cost = pl.CostEstimate(
        flops=2 * Mp * Kp * Np,
        transcendentals=0,
        bytes_accessed=(Mp * Kp + Kp * Np + Np + Mp * Np) * it,
    )

    if mode == "resident":
        resident_kw = dict(pipeline_mode=pl.Buffered(1)) if have_buffered else {}
        # NOTE: if xprof ever shows exposed DMA on the streamed x operand
        # (most likely v5e), bump its spec to pipeline_mode=pl.Buffered(3).
        yp = pl.pallas_call(
            _matmul_bias_kernel,
            out_shape=jax.ShapeDtypeStruct((Mp, Np), dtype),
            grid_spec=pltpu.PrefetchScalarGridSpec(
                num_scalar_prefetch=0,
                grid=(Mp // tm,),
                in_specs=[
                    pl.BlockSpec((tm, Kp), lambda i: (i, 0)),               # x strip
                    pl.BlockSpec((Kp, Np), lambda i: (0, 0), **resident_kw),  # W resident
                    pl.BlockSpec((1, Np), lambda i: (0, 0), **resident_kw),   # bias resident
                ],
                out_specs=pl.BlockSpec((tm, Np), lambda i: (i, 0)),
            ),
            compiler_params=pltpu.CompilerParams(
                dimension_semantics=("parallel",),
                vmem_limit_bytes=vmem_limit,
            ),
            cost_estimate=cost,
        )(xp, wp, bp)

    elif mode == "full_k":
        yp = pl.pallas_call(
            _matmul_bias_kernel,
            out_shape=jax.ShapeDtypeStruct((Mp, Np), dtype),
            grid_spec=pltpu.PrefetchScalarGridSpec(
                num_scalar_prefetch=0,
                grid=(Mp // tm, Np // tn),
                in_specs=[
                    pl.BlockSpec((tm, Kp), lambda i, j: (i, 0)),
                    pl.BlockSpec((Kp, tn), lambda i, j: (0, j)),
                    pl.BlockSpec((1, tn), lambda i, j: (0, j)),
                ],
                out_specs=pl.BlockSpec((tm, tn), lambda i, j: (i, j)),
            ),
            compiler_params=pltpu.CompilerParams(
                dimension_semantics=("parallel", "parallel"),
                vmem_limit_bytes=vmem_limit,
            ),
            cost_estimate=cost,
        )(xp, wp, bp)

    else:  # "k_split"
        grid = (Mp // tm, Np // tn, Kp // tk)
        in_specs = [
            pl.BlockSpec((tm, tk), lambda i, j, k: (i, k)),
            pl.BlockSpec((tk, tn), lambda i, j, k: (k, j)),
            pl.BlockSpec((1, tn), lambda i, j, k: (0, j)),
        ]
        out_spec = pl.BlockSpec((tm, tn), lambda i, j, k: (i, j))
        cparams = pltpu.CompilerParams(
            dimension_semantics=("parallel", "parallel", "arbitrary"),
            vmem_limit_bytes=vmem_limit,
        )
        if dtype == jnp.float32:
            yp = pl.pallas_call(
                _matmul_bias_kernel_ksplit_f32,
                out_shape=jax.ShapeDtypeStruct((Mp, Np), dtype),
                grid_spec=pltpu.PrefetchScalarGridSpec(
                    num_scalar_prefetch=0, grid=grid,
                    in_specs=in_specs, out_specs=out_spec),
                compiler_params=cparams,
                cost_estimate=cost,
            )(xp, wp, bp)
        else:
            yp = pl.pallas_call(
                _matmul_bias_kernel_ksplit_acc,
                out_shape=jax.ShapeDtypeStruct((Mp, Np), dtype),
                grid_spec=pltpu.PrefetchScalarGridSpec(
                    num_scalar_prefetch=0, grid=grid,
                    in_specs=in_specs, out_specs=out_spec,
                    scratch_shapes=[pltpu.VMEM((tm, tn), jnp.float32)]),
                compiler_params=cparams,
                cost_estimate=cost,
            )(xp, wp, bp)

    return yp[:M, :N]


# ----------------------------------------------------------------------------- #
# Wrapper: full PraxisSMEAR forward.
# ----------------------------------------------------------------------------- #
def praxis_smear_forward(params, inputs, current_state=None):
    B, S, H = inputs.shape

    # --- Router: softmax(Linear(mean_seq(x))) averaged over batch (tiny; XLA). ---
    pooled = inputs.mean(axis=1).astype(jnp.float32)                       # (B, H)
    logits = pooled @ params["router_w"].astype(jnp.float32).T \
        + params["router_b"].astype(jnp.float32)                           # (B, E)
    routing_probs = jax.nn.softmax(logits, axis=-1)                        # (B, E)
    expert_weights = routing_probs.mean(axis=0)                            # (E,)

    # --- Merge expert parameters (small; also pre-transposes PyTorch [out, in]
    #     weights to [in, out] so the kernel computes x @ W directly). ---
    merged_w_io = jnp.einsum("e,eoi->io", expert_weights,
                             params["experts_w"].astype(jnp.float32))      # (H_in, H_out)
    merged_b = expert_weights @ params["experts_b"].astype(jnp.float32)    # (H_out,)

    # --- Merged linear on the full inputs: the heavy matmul is the Pallas kernel.
    #     Compute stays in the input dtype (on v5e, feeding bf16 inputs halves
    #     HBM traffic and MXU passes if the model's precision budget allows). ---
    compute_dtype = inputs.dtype
    x2d = inputs.reshape(B * S, H)
    y2d = merged_linear(
        x2d,
        merged_w_io.astype(compute_dtype),
        merged_b.reshape(1, H).astype(compute_dtype),
    )
    outputs = y2d.reshape(B, S, H)

    new_state = None  # base expert (nn.Linear) produces no recurrent state
    return outputs, new_state, 0


if __name__ == "__main__":
    key = jax.random.PRNGKey(0)
    B, S, H, E = 2, 8, 32, 4
    k0, k1, k2, k3 = jax.random.split(key, 4)

    inputs = jax.random.normal(k0, (B, S, H), dtype=jnp.float32)
    params = dict(
        router_w=0.02 * jax.random.normal(k1, (E, H), dtype=jnp.float32),
        router_b=jnp.zeros((E,), dtype=jnp.float32),
        experts_w=0.02 * jax.random.normal(k2, (E, H, H), dtype=jnp.float32),
        experts_b=0.02 * jax.random.normal(k3, (E, H), dtype=jnp.float32),
    )

    outputs, new_state, aux = praxis_smear_forward(params, inputs)
    outputs = jax.block_until_ready(outputs)

    # Pure-JAX reference (same math as the PyTorch module in eval mode).
    pooled = inputs.mean(axis=1)
    probs = jax.nn.softmax(pooled @ params["router_w"].T + params["router_b"], axis=-1)
    ew_ref = probs.mean(axis=0)
    mw = (ew_ref[:, None, None] * params["experts_w"]).sum(axis=0)
    mb = (ew_ref[:, None] * params["experts_b"]).sum(axis=0)
    ref = inputs @ mw.T + mb

    assert outputs.shape == (B, S, H)
    assert new_state is None
    assert aux == 0
    assert jnp.allclose(outputs, ref, atol=1e-4, rtol=1e-4), "mismatch vs reference"

    print("KERNEL_OK")
</pallas_src>

<mosaic_0001>
module attributes {stable_mosaic.version = 11 : i64} {
  func.func @_matmul_bias_kernel(%arg0: i32, %arg1: memref<16x128xf32, #tpu.memory_space<vmem>>, %arg2: memref<128x128xf32, #tpu.memory_space<vmem>>, %arg3: memref<1x128xf32, #tpu.memory_space<vmem>>, %arg4: memref<16x128xf32, #tpu.memory_space<vmem>>) attributes {dimension_semantics = [#tpu.dimension_semantics<parallel>], iteration_bounds = array<i64: 1>, scalar_prefetch = 0 : i64, scratch_operands = 0 : i64, tpu.core_type = #tpu.core_type<tc>, window_params = [{transform_indices = @transform_0, window_bounds = array<i64: 16, 128>}, {pipeline_mode = #tpu.pipeline_mode<synchronous>, transform_indices = @transform_1, window_bounds = array<i64: 128, 128>}, {pipeline_mode = #tpu.pipeline_mode<synchronous>, transform_indices = @transform_2, window_bounds = array<i64: 1, 128>}, {transform_indices = @transform_3, window_bounds = array<i64: 16, 128>}]} {
    %c0 = arith.constant 0 : index
    %c0_0 = arith.constant 0 : index
    %0 = vector.load %arg1[%c0, %c0_0] : memref<16x128xf32, #tpu.memory_space<vmem>>, vector<16x128xf32>
    %c0_1 = arith.constant 0 : index
    %c0_2 = arith.constant 0 : index
    %1 = vector.load %arg2[%c0_1, %c0_2] : memref<128x128xf32, #tpu.memory_space<vmem>>, vector<128x128xf32>
    %cst = arith.constant dense<0.000000e+00> : vector<16x128xf32>
    %2 = tpu.matmul %0, %1, %cst {dimension_numbers = #tpu.dot_dimension_numbers<[1], [0], [0], [1], [0, 0, 1, 1], [], []>} : vector<16x128xf32>, vector<128x128xf32>, vector<16x128xf32> -> vector<16x128xf32>
    %c0_3 = arith.constant 0 : index
    %c0_4 = arith.constant 0 : index
    %3 = vector.load %arg3[%c0_3, %c0_4] : memref<1x128xf32, #tpu.memory_space<vmem>>, vector<1x128xf32>
    %4 = vector.broadcast %3 : vector<1x128xf32> to vector<16x128xf32>
    %5 = arith.addf %2, %4 : vector<16x128xf32>
    %c0_5 = arith.constant 0 : index
    %c0_6 = arith.constant 0 : index
    %6 = vector.load %arg4[%c0_5, %c0_6] : memref<16x128xf32, #tpu.memory_space<vmem>>, vector<16x128xf32>
    tpu.vector_store %arg4[%c0_5, %c0_6], %5 {strides = array<i32>} : memref<16x128xf32, #tpu.memory_space<vmem>>, vector<16x128xf32>,
    return
  }
  func.func @transform_0(%arg0: i32) -> (i32, i32) {
    %c0_i32 = arith.constant 0 : i32
    %c0_i32_0 = arith.constant 0 : i32
    return %arg0, %c0_i32 : i32, i32
  }
  func.func @transform_1(%arg0: i32) -> (i32, i32) {
    %c0_i32 = arith.constant 0 : i32
    %c0_i32_0 = arith.constant 0 : i32
    %c0_i32_1 = arith.constant 0 : i32
    return %c0_i32, %c0_i32_0 : i32, i32
  }
  func.func @transform_2(%arg0: i32) -> (i32, i32) {
    %c0_i32 = arith.constant 0 : i32
    %c0_i32_0 = arith.constant 0 : i32
    %c0_i32_1 = arith.constant 0 : i32
    return %c0_i32, %c0_i32_0 : i32, i32
  }
  func.func @transform_3(%arg0: i32) -> (i32, i32) {
    %c0_i32 = arith.constant 0 : i32
    %c0_i32_0 = arith.constant 0 : i32
    return %arg0, %c0_i32 : i32, i32
  }
}

</mosaic_0001>

<llo_original>
// kernel: tpu_custom_call.1
$region0: #{tpu_custom_call.1}
  #allocation0 [shape = 'u32[]', space=smem, size = 0x4, offset = 0x4, fixed_abs, tag = 'smem constant byte address 0x4 - core index']
  #allocation1 [shape = 'u32[72,128]{1,0:T(1,128)}', space=vmem, size = 0x9000, scoped, tag = 'internal scratch']
  %s0 = inlined_call_operand.hbm [shape: f32[16,128], index: 0, kind: input, shape index: {}]
  %s1 = inlined_call_operand.hbm [shape: f32[128,128], index: 1, kind: input, shape index: {}]
  %s2 = inlined_call_operand.vmem [shape: f32[1,128], index: 2, kind: input, shape index: {}]
  %s3 = inlined_call_operand.hbm [shape: f32[16,128], index: 3, kind: output, shape index: {}]
  %s4 = sld [smem:[#allocation0]]
  $region30: #{tpu_custom_call.1} parent=0
    _
  %s6 = ssub.s32 1, %s4
  %s7 = scalar_select 0, %s6, %s4
  $region1: #{tpu_custom_call.1} parent=0
    #allocation2 [shape = 'u8[8192]{0}', space=vmem, size = 0x2000, scoped, tag = 'input window, operand 0, single buffered']
    #allocation3 [shape = 's32[1]{0}', space=sflag, size = 0x4, scoped, tag = 'scoped memory for tpu_custom_call.1']
    #allocation4 [shape = 's32[1]{0}', space=sflag, size = 0x4, scoped, tag = 'scoped memory for tpu_custom_call.1']
    #allocation5 [shape = 'u8[65536]{0}', space=vmem, size = 0x10000, scoped, tag = 'input window, operand 1, single buffered']
    #allocation6 [shape = 's32[1]{0}', space=sflag, size = 0x4, scoped, tag = 'scoped memory for tpu_custom_call.1']
    #allocation7 [shape = 'u8[8192]{0}', space=vmem, size = 0x2000, scoped, tag = 'output window, operand 0, single buffered']
    %8 = vsyncpa [#allocation3], 0
    %9 = vsyncpa [#allocation6], 0
    %10 = vsyncpa [#allocation4], 0
    // Predicated region
    $region2: #{tpu_custom_call.1} parent=1 // pred_check
      _
    $region3: #{tpu_custom_call.1} parent=1 // pred_check_branch
      %12 = sbr.rel (0) target = $region5
    $region4: #{tpu_custom_call.1} parent=1 // pred_region
      %14 = vsyncadd [#allocation3], 0
      %s15 = sshll.u32 %s0, 4
      %s16 = int_to_ptr.hbm [resolvable:$true] %s15
      %s17 = sshll.u32 [#allocation2], 4
      %s18 = int_to_ptr.vmem [resolvable:$true] %s17
      %23 = dma.hbm_to_vmem [thread:$0]  %s16, 256, %s18, [#allocation3], 128, 128, 8
    $region5: #{tpu_custom_call.1} parent=1 // pred_fallthru
      _
    // Predicated region
    $region6: #{tpu_custom_call.1} parent=1 // pred_check
      _
    $region7: #{tpu_custom_call.1} parent=1 // pred_check_branch
      %25 = sbr.rel (0) target = $region9
    $region8: #{tpu_custom_call.1} parent=1 // pred_region
      %27 = vsyncadd [#allocation6], 0
      %s28 = sshll.u32 %s1, 4
      %s29 = int_to_ptr.hbm [resolvable:$true] %s28
      %s30 = sshll.u32 [#allocation5], 4
      %s31 = int_to_ptr.vmem [resolvable:$true] %s30
      %36 = dma.hbm_to_vmem [thread:$0]  %s29, 2048, %s31, [#allocation6], 128, 128, 8
    $region9: #{tpu_custom_call.1} parent=1 // pred_fallthru
      _
    // Predicated region
    $region10: #{tpu_custom_call.1} parent=1 // pred_check
      _
    $region11: #{tpu_custom_call.1} parent=1 // pred_check_branch
      %38 = sbr.rel (0) target = $region13
    $region12: #{tpu_custom_call.1} parent=1 // pred_region
      _
    $region13: #{tpu_custom_call.1} parent=1 // pred_fallthru
      _
    // Predicated region
    $region14: #{tpu_custom_call.1} parent=1 // pred_check
      _
    $region15: #{tpu_custom_call.1} parent=1 // pred_check_branch
      %40 = sbr.rel (0) target = $region17
    $region16: #{tpu_custom_call.1} parent=1 // pred_region
      %42 = dma.done [#allocation3], 256
    $region17: #{tpu_custom_call.1} parent=1 // pred_fallthru
      _
    // Predicated region
    $region18: #{tpu_custom_call.1} parent=1 // pred_check
      _
    $region19: #{tpu_custom_call.1} parent=1 // pred_check_branch
      %44 = sbr.rel (0) target = $region21
    $region20: #{tpu_custom_call.1} parent=1 // pred_region
      %46 = dma.done [#allocation6], 2048
    $region21: #{tpu_custom_call.1} parent=1 // pred_fallthru
      _
    %v47 = vld [vmem:[#allocation2] sm:$0xff]
    %v48 = vld [vmem:[#allocation2 + $0x8] sm:$0xff]
    %v49 = vld [vmem:[#allocation5] sm:$0xff]
    %v50 = vld [vmem:[#allocation5 + $0x8] sm:$0xff]
    %v51 = vld [vmem:[#allocation5 + $0x10] sm:$0xff]
    %v52 = vld [vmem:[#allocation5 + $0x18] sm:$0xff]
    %v53 = vld [vmem:[#allocation5 + $0x20] sm:$0xff]
    %v54 = vld [vmem:[#allocation5 + $0x28] sm:$0xff]
    %v55 = vld [vmem:[#allocation5 + $0x30] sm:$0xff]
    %v56 = vld [vmem:[#allocation5 + $0x38] sm:$0xff]
    %v57 = vld [vmem:[#allocation5 + $0x40] sm:$0xff]
    %v58 = vld [vmem:[#allocation5 + $0x48] sm:$0xff]
    %v59 = vld [vmem:[#allocation5 + $0x50] sm:$0xff]
    %v60 = vld [vmem:[#allocation5 + $0x58] sm:$0xff]
    %v61 = vld [vmem:[#allocation5 + $0x60] sm:$0xff]
    %v62 = vld [vmem:[#allocation5 + $0x68] sm:$0xff]
    %v63 = vld [vmem:[#allocation5 + $0x70] sm:$0xff]
    %v64 = vld [vmem:[#allocation5 + $0x78] sm:$0xff]
    %v65 = vld [vmem:[%s2] sm:$0x1]
    %v67 = vperm.slane %v65, 0
    %69 = vmatpush.msra.mxu0 %v64
    %70 = vmatpush.msra.mxu0 %v63
    %71 = vmatpush.msra.mxu0 %v62
    %72 = vmatpush.msra.mxu0 %v61
    %73 = vmatpush.msra.mxu0 %v60
    %74 = vmatpush.msra.mxu0 %v59
    %75 = vmatpush.msra.mxu0 %v58
    %76 = vmatpush.msra.mxu0 %v57
    %77 = vmatpush.msra.mxu0 %v56
    %78 = vmatpush.msra.mxu0 %v55
    %79 = vmatpush.msra.mxu0 %v54
    %80 = vmatpush.msra.mxu0 %v53
    %81 = vmatpush.msra.mxu0 %v52
    %82 = vmatpush.msra.mxu0 %v51
    %83 = vmatpush.msra.mxu0 %v50
    %84 = vmatpush.msra.mxu0 %v49
    %85 = vmatmul.f32.gmra.mxu0 %v47
    %v86 = vpop.f32.mrf.mxu0
    %v87 = vadd.f32 %v67, %v86
    %88 = vmatmul.f32.gmra.mxu0 %v48
    %v89 = vpop.f32.mrf.mxu0
    %v90 = vadd.f32 %v67, %v89
    %91 = vdwg.mxu0
    %92 = vst [vmem:[#allocation7] sm:$0xff] %v87
    %93 = vst [vmem:[#allocation7 + $0x8] sm:$0xff] %v90
    // Predicated region
    $region22: #{tpu_custom_call.1} parent=1 // pred_check
      _
    $region23: #{tpu_custom_call.1} parent=1 // pred_check_branch
      %95 = sbr.rel (0) target = $region25
    $region24: #{tpu_custom_call.1} parent=1 // pred_region
      %97 = vsyncadd [#allocation4], 0
      %s98 = sshll.u32 [#allocation7], 4
      %s99 = int_to_ptr.vmem [resolvable:$true] %s98
      %s100 = sshll.u32 %s3, 4
      %s101 = int_to_ptr.hbm [resolvable:$true] %s100
      %106 = dma.vmem_to_hbm [thread:$0]  %s99, 256, %s101, [#allocation4], 128, 128, 8
    $region25: #{tpu_custom_call.1} parent=1 // pred_fallthru
      _
    // Predicated region
    $region26: #{tpu_custom_call.1} parent=1 // pred_check
      _
    $region27: #{tpu_custom_call.1} parent=1 // pred_check_branch
      %108 = sbr.rel (0) target = $region29
    $region28: #{tpu_custom_call.1} parent=1 // pred_region
      %110 = dma.done [#allocation4], 256
    $region29: #{tpu_custom_call.1} parent=1 // pred_fallthru
      _
    %111 = vsyncpa [#allocation3], 1
    %112 = vsyncpa [#allocation6], 1
    %113 = vsyncpa [#allocation4], 1

</llo_original>
